<compile_context>
chip_gen: v6e
topology: v6e:2x2x1
jax: 0.10.0
libtpu: 0.0.40
codegen_flags: <defaults>
</compile_context>

<pallas_src>
import functools

import jax
import jax.numpy as jnp
from jax import lax
from jax.experimental import pallas as pl
from jax.experimental.pallas import tpu as pltpu


def _round_up(x, m):
    return (x + m - 1) // m * m


def _ea_kernel(q_ref, wk_ref, wv_ref, o_ref, p_cache_ref, inv_colsum_ref,
               *, n_valid, s_valid, tile_n, n_tiles, unroll):
    """grid = (B, n_tiles).  t == 0 builds the per-batch softmax stats + p cache."""
    t = pl.program_id(1)
    s_pad = wk_ref.shape[1]
    n_pad = n_tiles * tile_n
    has_pad_rows = n_valid < n_pad                      # static Python bool

    @pl.when(t == 0)
    def _build_stats_and_cache():
        # ---- Sweep A: logits = q @ Wk^T, written to the cache; max-only column
        # reduction.  No row masking needed: the softmax shift cancels, so a max
        # that includes the padded (zero-logit) rows is still a valid shift.
        def body_a(i, cmax):
            start = pl.multiple_of(i * tile_n, tile_n)
            q_i = q_ref[0, pl.ds(start, tile_n), :]                   # (TN, D_pad) bf16
            lg = jnp.dot(q_i, wk_ref[...],
                         preferred_element_type=jnp.float32)          # (TN, S_pad) f32
            p_cache_ref[pl.ds(start, tile_n), :] = lg
            return jnp.maximum(cmax, jnp.max(lg, axis=0, keepdims=True))

        cmax = lax.fori_loop(0, n_tiles, body_a,
                             jnp.full((1, s_pad), -jnp.inf, jnp.float32),
                             unroll=unroll)

        # ---- Sweep B: cache <- p = exp(logits - colmax); accumulate column sums.
        def body_b(i, csum):
            start = pl.multiple_of(i * tile_n, tile_n)
            p = jnp.exp(p_cache_ref[pl.ds(start, tile_n), :] - cmax)
            p_cache_ref[pl.ds(start, tile_n), :] = p
            return csum + jnp.sum(p, axis=0, keepdims=True)

        csum = jnp.zeros((1, s_pad), jnp.float32)
        n_full = n_tiles - 1 if has_pad_rows else n_tiles
        if n_full > 0:
            csum = lax.fori_loop(0, n_full, body_b, csum, unroll=unroll)

        if has_pad_rows:
            # Only the last tile can contain padded N rows; mask them once here
            # (outside the streaming loop) so they never enter the column sums.
            start = (n_tiles - 1) * tile_n
            p = jnp.exp(p_cache_ref[pl.ds(start, tile_n), :] - cmax)
            row_ids = lax.broadcasted_iota(jnp.int32, (tile_n, s_pad), 0) + start
            p = jnp.where(row_ids < n_valid, p, 0.0)
            p_cache_ref[pl.ds(start, tile_n), :] = p
            csum = csum + jnp.sum(p, axis=0, keepdims=True)

        inv = 1.0 / csum                                               # exact reciprocal
        col_ids = lax.broadcasted_iota(jnp.int32, (1, s_pad), 1)
        inv_colsum_ref[...] = jnp.where(col_ids < s_valid, inv, 0.0)   # kill padded S cols

    # ---- Pass 2 (every grid step): normalize this N tile and apply Wv^T.
    start = pl.multiple_of(t * tile_n, tile_n)
    attn = p_cache_ref[pl.ds(start, tile_n), :] * inv_colsum_ref[...]  # softmax over N
    row_sum = jnp.sum(attn, axis=1, keepdims=True)                     # (TN, 1)
    # Exact reciprocal (negligible cost on a (TN,1) vector); the clamp keeps the
    # padded (all-zero) rows at exactly 0 instead of 0 * inf = NaN.
    attn = attn * (1.0 / jnp.maximum(row_sum, 1e-30))                  # renorm over S
    out = jnp.dot(attn.astype(wv_ref.dtype), wv_ref[...],
                  preferred_element_type=jnp.float32)                  # (TN, D_pad)
    o_ref[0] = out.astype(o_ref.dtype)


def external_attention(queries, mk_weight, mv_weight, *, tile_n=None):
    """ExternalAttention forward.

    queries:   (B, N, d_model) float32
    mk_weight: (S, d_model)   -- PyTorch nn.Linear(d_model, S).weight
    mv_weight: (d_model, S)   -- PyTorch nn.Linear(S, d_model).weight
    """
    B, N, D = queries.shape
    S = mk_weight.shape[0]
    assert mk_weight.shape == (S, D)
    assert mv_weight.shape == (D, S)

    D_pad = _round_up(D, 128)
    S_pad = _round_up(S, 128)
    if tile_n is None:
        # 128-aligned MXU M tile; keep the live (tile_n, S_pad) f32 intermediate
        # around 1 MiB so it doesn't spill out of the vreg file.
        tile_n = 256 if S_pad <= 1024 else 128
    tile_n = min(_round_up(tile_n, 128), _round_up(N, 128))
    N_pad = _round_up(N, tile_n)
    n_tiles = N_pad // tile_n
    unroll = True if n_tiles <= 8 else 2

    # Host-side zero pad + bf16 cast of the MXU operands (lane-dense tiles).
    # TODO(synk): for large N*D, fuse the pad/cast producer into the kernel
    # (allow_input_fusion or in-kernel cast) to avoid the extra HBM round trip.
    q_pad = jnp.zeros((B, N_pad, D_pad), jnp.bfloat16)
    q_pad = q_pad.at[:, :N, :D].set(queries.astype(jnp.bfloat16))
    wk_t = jnp.zeros((D_pad, S_pad), jnp.bfloat16)                     # Wk^T, padded
    wk_t = wk_t.at[:D, :S].set(mk_weight.T.astype(jnp.bfloat16))
    wv_t = jnp.zeros((S_pad, D_pad), jnp.bfloat16)                     # Wv^T, padded
    wv_t = wv_t.at[:S, :D].set(mv_weight.T.astype(jnp.bfloat16))

    kernel = functools.partial(_ea_kernel, n_valid=N, s_valid=S,
                               tile_n=tile_n, n_tiles=n_tiles, unroll=unroll)

    # VMEM budget (weights single-buffered, q double-buffered per batch, p cache).
    needed = (2 * N_pad * D_pad * 2          # q batch block (bf16), double-buffered
              + D_pad * S_pad * 2            # Wk^T, single resident copy
              + S_pad * D_pad * 2            # Wv^T, single resident copy
              + 2 * tile_n * D_pad * 4       # output tile (f32), double-buffered
              + N_pad * S_pad * 4            # logits -> p cache (f32)
              + 8 * S_pad * 4                # column-stats scratch
              + 4 * tile_n * S_pad * 4       # live f32 intermediates
              + (4 << 20))                   # compiler scratch slack
    try:
        vmem_cap = int(pltpu.get_tpu_info().vmem_capacity_bytes)
    except Exception:                        # defensive fallback
        vmem_cap = 64 << 20
    usable = max(32 << 20, vmem_cap - (16 << 20))   # ~112 MiB v5e/v6e, ~48 MiB v7x
    vmem_limit = int(min(max(needed, 32 << 20), usable))
    # TODO(synk): for very large N the resident q block + p cache can exceed the
    # v7x budget; split into a stats pallas_call + fully-"parallel" apply pass.

    cost = pl.CostEstimate(
        flops=int(2 * 2 * B * N_pad * D_pad * S_pad),     # the two matmuls
        transcendentals=int(B * N_pad * S_pad),           # single exp pass
        bytes_accessed=int(q_pad.size * 2 + wk_t.size * 2 + wv_t.size * 2
                           + B * N_pad * D_pad * 4))

    out_pad = pl.pallas_call(
        kernel,
        out_shape=jax.ShapeDtypeStruct((B, N_pad, D_pad), queries.dtype),
        grid_spec=pltpu.PrefetchScalarGridSpec(
            num_scalar_prefetch=0,
            grid=(B, n_tiles),
            in_specs=[
                # Full (padded) sequence per batch row; constant block index
                # across the N-tile axis -> DMA'd once per batch.
                pl.BlockSpec((1, N_pad, D_pad), lambda b, t: (b, 0, 0)),
                # Constant weights: whole array resident in VMEM, no per-step
                # pipelining / double buffering.
                pl.BlockSpec(memory_space=pltpu.MemorySpace.VMEM),     # Wk^T
                pl.BlockSpec(memory_space=pltpu.MemorySpace.VMEM),     # Wv^T
            ],
            out_specs=pl.BlockSpec((1, tile_n, D_pad), lambda b, t: (b, t, 0)),
            scratch_shapes=[
                pltpu.VMEM((N_pad, S_pad), jnp.float32),   # logits -> p cache
                pltpu.VMEM((1, S_pad), jnp.float32),       # 1 / column sum of exp
            ],
        ),
        compiler_params=pltpu.CompilerParams(
            dimension_semantics=("parallel", "arbitrary"),
            vmem_limit_bytes=vmem_limit),
        cost_estimate=cost,
    )(q_pad, wk_t, wv_t)

    return out_pad[:, :N, :D]


def external_attention_ref(queries, mk_weight, mv_weight):
    """Pure-JAX reference mirroring the PyTorch module (f32 throughout)."""
    attn = jnp.einsum("bnd,sd->bns", queries, mk_weight)
    attn = jax.nn.softmax(attn, axis=1)
    attn = attn / jnp.sum(attn, axis=2, keepdims=True)
    return jnp.einsum("bns,ds->bnd", attn, mv_weight)


if __name__ == "__main__":
    # Small shapes consistent with the module: d_model=32, S=64, batch=2, seq=8.
    B, N, d_model, S = 2, 8, 32, 64

    key = jax.random.PRNGKey(0)
    kq, kk, kv = jax.random.split(key, 3)

    queries = jax.random.normal(kq, (B, N, d_model), dtype=jnp.float32)

    # nn.Linear weights initialized with init.normal_(std=0.001), no bias.
    mk_weight = 0.001 * jax.random.normal(kk, (S, d_model), dtype=jnp.float32)  # mk.weight
    mv_weight = 0.001 * jax.random.normal(kv, (d_model, S), dtype=jnp.float32)  # mv.weight

    out = external_attention(queries, mk_weight, mv_weight)
    out = jax.block_until_ready(out)

    ref = external_attention_ref(queries, mk_weight, mv_weight)
    assert out.shape == (B, N, d_model)

    # bf16 matmul inputs -> looser tolerance than the exact f32 reference.
    err = float(jnp.max(jnp.abs(out - ref)))
    scale = float(jnp.max(jnp.abs(ref)))
    assert err <= 5e-2 * scale + 1e-6, f"mismatch vs reference: err={err}, scale={scale}"

    print("KERNEL_OK")
</pallas_src>

<mosaic_0001>
module attributes {stable_mosaic.version = 11 : i64} {
  func.func @_ea_kernel(%arg0: i32, %arg1: i32, %arg2: memref<1x128x128xbf16, #tpu.memory_space<vmem>>, %arg3: memref<128x128xbf16, #tpu.memory_space<vmem>>, %arg4: memref<128x128xbf16, #tpu.memory_space<vmem>>, %arg5: memref<1x128x128xf32, #tpu.memory_space<vmem>>, %arg6: memref<128x128xf32, #tpu.memory_space<vmem>>, %arg7: memref<1x128xf32, #tpu.memory_space<vmem>>) attributes {dimension_semantics = [#tpu.dimension_semantics<parallel>, #tpu.dimension_semantics<arbitrary>], iteration_bounds = array<i64: 2, 1>, scalar_prefetch = 0 : i64, scratch_operands = 2 : i64, tpu.core_type = #tpu.core_type<tc>, window_params = [{transform_indices = @transform_0, window_bounds = array<i64: 1, 128, 128>}, {pipeline_mode = #tpu.pipeline_mode<synchronous>, transform_indices = @transform_1, window_bounds = array<i64: 128, 128>}, {pipeline_mode = #tpu.pipeline_mode<synchronous>, transform_indices = @transform_2, window_bounds = array<i64: 128, 128>}, {transform_indices = @transform_3, window_bounds = array<i64: 1, 128, 128>}]} {
    %c0_i32 = arith.constant 0 : i32
    %0 = arith.cmpi eq, %arg1, %c0_i32 : i32
    %1 = arith.extui %0 : i1 to i32
    %c0_i32_0 = arith.constant 0 : i32
    %2 = arith.cmpi ne, %1, %c0_i32_0 : i32
    scf.if %2 {
      %cst_11 = arith.constant 0xFF800000 : f32
      %24 = vector.broadcast %cst_11 : f32 to vector<1x128xf32>
      %c0_i32_12 = arith.constant 0 : i32
      %c128_i32_13 = arith.constant 128 : i32
      %25 = arith.muli %c0_i32_12, %c128_i32_13 : i32
      %26 = tpu.assume_multiple %25, 128 : i32
      %c0_14 = arith.constant 0 : index
      %27 = arith.index_cast %26 : i32 to index
      %c0_15 = arith.constant 0 : index
      %28 = vector.load %arg2[%c0_14, %27, %c0_15] : memref<1x128x128xbf16, #tpu.memory_space<vmem>>, vector<1x128x128xbf16>
      %29 = vector.shape_cast %28 : vector<1x128x128xbf16> to vector<128x128xbf16>
      %c0_16 = arith.constant 0 : index
      %c0_17 = arith.constant 0 : index
      %30 = vector.load %arg3[%c0_16, %c0_17] : memref<128x128xbf16, #tpu.memory_space<vmem>>, vector<128x128xbf16>
      %cst_18 = arith.constant dense<0.000000e+00> : vector<128x128xf32>
      %31 = tpu.matmul %29, %30, %cst_18 {dimension_numbers = #tpu.dot_dimension_numbers<[1], [0], [0], [1], [0, 0, 1, 1], [], []>} : vector<128x128xbf16>, vector<128x128xbf16>, vector<128x128xf32> -> vector<128x128xf32>
      %32 = arith.index_cast %26 : i32 to index
      %c0_19 = arith.constant 0 : index
      %33 = vector.load %arg6[%32, %c0_19] : memref<128x128xf32, #tpu.memory_space<vmem>>, vector<128x128xf32>
      tpu.vector_store %arg6[%32, %c0_19], %31 {strides = array<i32>} : memref<128x128xf32, #tpu.memory_space<vmem>>, vector<128x128xf32>,
      %cst_20 = arith.constant dense<0xFF800000> : vector<128xf32>
      %34 = vector.multi_reduction <maximumf>, %31, %cst_20 [0] : vector<128x128xf32> to vector<128xf32>
      %35 = vector.shape_cast %34 : vector<128xf32> to vector<1x128xf32>
      %36 = arith.maximumf %24, %35 : vector<1x128xf32>
      %c1_i32 = arith.constant 1 : i32
      %cst_21 = arith.constant 0.000000e+00 : f32
      %37 = vector.broadcast %cst_21 : f32 to vector<1x128xf32>
      %c0_22 = arith.constant 0 : index
      %c0_23 = arith.constant 0 : index
      %38 = vector.load %arg6[%c0_22, %c0_23] : memref<128x128xf32, #tpu.memory_space<vmem>>, vector<128x128xf32>
      %39 = vector.broadcast %36 : vector<1x128xf32> to vector<128x128xf32>
      %40 = arith.subf %38, %39 : vector<128x128xf32>
      %41 = math.exp %40 : vector<128x128xf32>
      %42 = tpu.iota {dimensions = array<i32: 0>} : vector<128x128xi32>
      %c0_i32_24 = arith.constant 0 : i32
      %43 = vector.broadcast %c0_i32_24 : i32 to vector<128x128xi32>
      %44 = arith.addi %42, %43 : vector<128x128xi32>
      %c8_i32 = arith.constant 8 : i32
      %45 = vector.broadcast %c8_i32 : i32 to vector<128x128xi32>
      %46 = arith.cmpi slt, %44, %45 : vector<128x128xi32>
      %cst_25 = arith.constant 0.000000e+00 : f32
      %47 = vector.broadcast %cst_25 : f32 to vector<128x128xf32>
      %48 = arith.select %46, %41, %47 : vector<128x128xi1>, vector<128x128xf32>
      %c0_26 = arith.constant 0 : index
      %c0_27 = arith.constant 0 : index
      %49 = vector.load %arg6[%c0_26, %c0_27] : memref<128x128xf32, #tpu.memory_space<vmem>>, vector<128x128xf32>
      tpu.vector_store %arg6[%c0_26, %c0_27], %48 {strides = array<i32>} : memref<128x128xf32, #tpu.memory_space<vmem>>, vector<128x128xf32>,
      %cst_28 = arith.constant dense<0.000000e+00> : vector<128xf32>
      %50 = vector.multi_reduction <add>, %48, %cst_28 [0] : vector<128x128xf32> to vector<128xf32>
      %51 = vector.shape_cast %50 : vector<128xf32> to vector<1x128xf32>
      %52 = arith.addf %37, %51 : vector<1x128xf32>
      %cst_29 = arith.constant 1.000000e+00 : f32
      %53 = vector.broadcast %cst_29 : f32 to vector<1x128xf32>
      %54 = arith.divf %53, %52 : vector<1x128xf32>
      %55 = tpu.iota {dimensions = array<i32: 1>} : vector<1x128xi32>
      %c64_i32 = arith.constant 64 : i32
      %56 = vector.broadcast %c64_i32 : i32 to vector<1x128xi32>
      %57 = arith.cmpi slt, %55, %56 : vector<1x128xi32>
      %cst_30 = arith.constant 0.000000e+00 : f32
      %58 = vector.broadcast %cst_30 : f32 to vector<1x128xf32>
      %59 = arith.select %57, %54, %58 : vector<1x128xi1>, vector<1x128xf32>
      %c0_31 = arith.constant 0 : index
      %c0_32 = arith.constant 0 : index
      %60 = vector.load %arg7[%c0_31, %c0_32] : memref<1x128xf32, #tpu.memory_space<vmem>>, vector<1x128xf32>
      tpu.vector_store %arg7[%c0_31, %c0_32], %59 {strides = array<i32>} : memref<1x128xf32, #tpu.memory_space<vmem>>, vector<1x128xf32>,
    } else {
    }
    %c128_i32 = arith.constant 128 : i32
    %3 = arith.muli %arg1, %c128_i32 : i32
    %4 = tpu.assume_multiple %3, 128 : i32
    %5 = arith.index_cast %4 : i32 to index
    %c0 = arith.constant 0 : index
    %6 = vector.load %arg6[%5, %c0] : memref<128x128xf32, #tpu.memory_space<vmem>>, vector<128x128xf32>
    %c0_1 = arith.constant 0 : index
    %c0_2 = arith.constant 0 : index
    %7 = vector.load %arg7[%c0_1, %c0_2] : memref<1x128xf32, #tpu.memory_space<vmem>>, vector<1x128xf32>
    %8 = vector.broadcast %7 : vector<1x128xf32> to vector<128x128xf32>
    %9 = arith.mulf %6, %8 : vector<128x128xf32>
    %cst = arith.constant dense<0.000000e+00> : vector<128xf32>
    %10 = vector.multi_reduction <add>, %9, %cst [1] : vector<128x128xf32> to vector<128xf32>
    %11 = vector.shape_cast %10 : vector<128xf32> to vector<128x1xf32>
    %cst_3 = arith.constant 1.000000e-30 : f32
    %12 = vector.broadcast %cst_3 : f32 to vector<128x1xf32>
    %13 = arith.maximumf %11, %12 : vector<128x1xf32>
    %cst_4 = arith.constant 1.000000e+00 : f32
    %14 = vector.broadcast %cst_4 : f32 to vector<128x1xf32>
    %15 = arith.divf %14, %13 : vector<128x1xf32>
    %16 = vector.broadcast %15 : vector<128x1xf32> to vector<128x128xf32>
    %17 = arith.mulf %9, %16 : vector<128x128xf32>
    %18 = arith.truncf %17 : vector<128x128xf32> to vector<128x128xbf16>
    %c0_5 = arith.constant 0 : index
    %c0_6 = arith.constant 0 : index
    %19 = vector.load %arg4[%c0_5, %c0_6] : memref<128x128xbf16, #tpu.memory_space<vmem>>, vector<128x128xbf16>
    %cst_7 = arith.constant dense<0.000000e+00> : vector<128x128xf32>
    %20 = tpu.matmul %18, %19, %cst_7 {dimension_numbers = #tpu.dot_dimension_numbers<[1], [0], [0], [1], [0, 0, 1, 1], [], []>} : vector<128x128xbf16>, vector<128x128xbf16>, vector<128x128xf32> -> vector<128x128xf32>
    %c0_8 = arith.constant 0 : index
    %c0_9 = arith.constant 0 : index
    %c0_10 = arith.constant 0 : index
    %21 = vector.load %arg5[%c0_8, %c0_9, %c0_10] : memref<1x128x128xf32, #tpu.memory_space<vmem>>, vector<1x128x128xf32>
    %22 = vector.shape_cast %21 : vector<1x128x128xf32> to vector<128x128xf32>
    %23 = vector.shape_cast %20 : vector<128x128xf32> to vector<1x128x128xf32>
    tpu.vector_store %arg5[%c0_8, %c0_9, %c0_10], %23 {strides = array<i32>} : memref<1x128x128xf32, #tpu.memory_space<vmem>>, vector<1x128x128xf32>,
    return
  }
  func.func @transform_0(%arg0: i32, %arg1: i32) -> (i32, i32, i32) {
    %c0_i32 = arith.constant 0 : i32
    %c0_i32_0 = arith.constant 0 : i32
    %c0_i32_1 = arith.constant 0 : i32
    return %arg0, %c0_i32, %c0_i32_0 : i32, i32, i32
  }
  func.func @transform_1(%arg0: i32, %arg1: i32) -> (i32, i32) {
    %c0_i32 = arith.constant 0 : i32
    %c0_i32_0 = arith.constant 0 : i32
    %c0_i32_1 = arith.constant 0 : i32
    return %c0_i32, %c0_i32_0 : i32, i32
  }
  func.func @transform_2(%arg0: i32, %arg1: i32) -> (i32, i32) {
    %c0_i32 = arith.constant 0 : i32
    %c0_i32_0 = arith.constant 0 : i32
    %c0_i32_1 = arith.constant 0 : i32
    return %c0_i32, %c0_i32_0 : i32, i32
  }
  func.func @transform_3(%arg0: i32, %arg1: i32) -> (i32, i32, i32) {
    %c0_i32 = arith.constant 0 : i32
    %c0_i32_0 = arith.constant 0 : i32
    return %arg0, %arg1, %c0_i32 : i32, i32, i32
  }
}

</mosaic_0001>

<llo_original>
// kernel: tpu_custom_call.1
$region0: #{tpu_custom_call.1}
  #allocation0 [shape = 'u32[]', space=smem, size = 0x4, offset = 0x4, fixed_abs, tag = 'smem constant byte address 0x4 - core index']
  #allocation1 [shape = 'u32[144,128]{1,0:T(1,128)}', space=vmem, size = 0x12000, scoped, tag = 'internal scratch']
  #allocation2 [shape = 'f32[128,128]{1,0:T(8,128)}', space=vmem, size = 0x10000, scoped, tag = 'scratch operand']
  #allocation3 [shape = 'f32[1,128]{1,0:T(1,128)}', space=vmem, size = 0x200, scoped, tag = 'scratch operand']
  %s0 = inlined_call_operand.hbm [shape: bf16[2,128,128], index: 0, kind: input, shape index: {}]
  %s1 = inlined_call_operand.hbm [shape: bf16[128,128], index: 1, kind: input, shape index: {}]
  %s2 = inlined_call_operand.hbm [shape: bf16[128,128], index: 2, kind: input, shape index: {}]
  %s3 = inlined_call_operand.hbm [shape: f32[2,128,128], index: 3, kind: output, shape index: {}]
  %s4 = sld [smem:[#allocation0]]
  $region61: #{tpu_custom_call.1} parent=0
    _
  %s6 = ssub.s32 1, %s4
  %s7 = scalar_select 0, %s6, %s4
  $region1: #{tpu_custom_call.1} parent=0
    #allocation4 [shape = 'u8[65536]{0}', space=vmem, size = 0x10000, scoped, tag = 'input window, operand 0']
    #allocation5 [shape = 's32[2]{0}', space=sflag, size = 0x8, scoped, tag = 'scoped memory for tpu_custom_call.1']
    #allocation6 [shape = 's32[2]{0}', space=sflag, size = 0x8, scoped, tag = 'scoped memory for tpu_custom_call.1']
    #allocation7 [shape = 'u8[32768]{0}', space=vmem, size = 0x8000, scoped, tag = 'input window, operand 1, single buffered']
    #allocation8 [shape = 's32[1]{0}', space=sflag, size = 0x4, scoped, tag = 'scoped memory for tpu_custom_call.1']
    #allocation9 [shape = 'u8[32768]{0}', space=vmem, size = 0x8000, scoped, tag = 'input window, operand 2, single buffered']
    #allocation10 [shape = 'u8[131072]{0}', space=vmem, size = 0x20000, scoped, tag = 'output window, operand 0']
    %8 = vsyncpa [#allocation5], 0
    %s9 = scalar_lea.sflag [#allocation5], 1
    %10 = vsyncpa %s9, 0
    %11 = vsyncpa [#allocation8], 0
    %12 = vsyncpa [#allocation6], 0
    %s13 = scalar_lea.sflag [#allocation6], 1
    %14 = vsyncpa %s13, 0
    loop: start=0, step=1, limit=4
    $region2: #{tpu_custom_call.1} parent=1 // loop_pre_header
      _
    $region3: #{tpu_custom_call.1} parent=1 // loop_header
      %s16 = sphi 0, %s20
      %p17 = scmp.ge.s32.totalorder %s16, 4
      %s23 = sphi 0, %s35
      %s24 = sphi 0, %s31
      %s25 = sphi 0, %s23
      %s26 = sphi 0, %s24
      %s27 = sphi 0, %s25
      %s28 = sphi 0, %s26
      %s38 = sphi 0, %s40
      %s41 = sphi 0, %s38
      %s42 = sphi 0, %s41
      %s58 = sphi 0, %s42
      %s62 = sphi 0, %s62
      %s64 = sphi 0, %s62
      %s65 = sphi 0, %s64
      %s79 = sphi 0, %s65
      %s83 = sphi 0, %s83
      %s85 = sphi 0, %s83
      %s86 = sphi 0, %s85
      %s100 = sphi 0, %s86
      %s108 = sphi 0, %s110
      %s111 = sphi 0, %s108
      %s112 = sphi 0, %s111
      %s128 = sphi 0, %s112
    $region4: #{tpu_custom_call.1} parent=1 // loop_header_branch
      %19 = sbr.rel (%p17) target = $region8
    $region5: #{tpu_custom_call.1} parent=1 // loop_body
      %s21 = ssub.s32 %s16, 1
      %s22 = ssub.s32 %s16, 2
      %s29 = sadd.s32 1, %s24
      %p30 = scmp.ge.s32.totalorder %s29, 1
      %s31 = scalar_select %p30, 0, %s29
      %s32 = sadd.s32 1, %s23
      %s33 = scalar_select %p30, %s32, %s23
      %p34 = scmp.ge.s32.totalorder %s33, 2
      %s35 = scalar_select %p34, 0, %s33
      %s36 = ssub.s32 %s23, %s35
      %p37 = scmp.eq.s32.totalorder %s36, 0
      %s39 = sadd.s32 %s38, 1
      %s40 = scalar_select %p37, %s38, %s39
      %p43 = pneg %p37
      %p44 = scmp.eq.s32.totalorder %s16, 1
      %p45 = por %p43, %p44
      %p46 = scmp.ne.s32.totalorder %s38, %s41
      %p47 = scmp.eq.s32.totalorder %s16, 0
      %p48 = por %p46, %p47
      %p49 = scmp.ne.s32.totalorder %s38, %s41
      %p50 = scmp.eq.s32.totalorder %s21, 1
      %p51 = por %p49, %p50
      %p52 = scmp.ne.s32.totalorder %s41, %s42
      %p53 = scmp.eq.s32.totalorder %s21, 0
      %p54 = por %p52, %p53
      %p55 = scmp.ne.s32.totalorder %s41, %s42
      %p56 = scmp.eq.s32.totalorder %s22, 1
      %p57 = por %p55, %p56
      %p59 = scmp.ne.s32.totalorder %s42, %s58
      %p60 = scmp.eq.s32.totalorder %s22, 0
      %p61 = por %p59, %p60
      %s63 = sadd.s32 %s62, 1
      %p66 = scmp.eq.s32.totalorder %s16, 1
      %p67 = scmp.ne.s32.totalorder %s62, %s64
      %p68 = scmp.eq.s32.totalorder %s16, 0
      %p69 = por %p67, %p68
      %p70 = scmp.ne.s32.totalorder %s62, %s64
      %p71 = scmp.eq.s32.totalorder %s21, 1
      %p72 = por %p70, %p71
      %p73 = scmp.ne.s32.totalorder %s64, %s65
      %p74 = scmp.eq.s32.totalorder %s21, 0
      %p75 = por %p73, %p74
      %p76 = scmp.ne.s32.totalorder %s64, %s65
      %p77 = scmp.eq.s32.totalorder %s22, 1
      %p78 = por %p76, %p77
      %p80 = scmp.ne.s32.totalorder %s65, %s79
      %p81 = scmp.eq.s32.totalorder %s22, 0
      %p82 = por %p80, %p81
      %s84 = sadd.s32 %s83, 1
      %p87 = scmp.eq.s32.totalorder %s16, 1
      %p88 = scmp.ne.s32.totalorder %s83, %s85
      %p89 = scmp.eq.s32.totalorder %s16, 0
      %p90 = por %p88, %p89
      %p91 = scmp.ne.s32.totalorder %s83, %s85
      %p92 = scmp.eq.s32.totalorder %s21, 1
      %p93 = por %p91, %p92
      %p94 = scmp.ne.s32.totalorder %s85, %s86
      %p95 = scmp.eq.s32.totalorder %s21, 0
      %p96 = por %p94, %p95
      %p97 = scmp.ne.s32.totalorder %s85, %s86
      %p98 = scmp.eq.s32.totalorder %s22, 1
      %p99 = por %p97, %p98
      %p101 = scmp.ne.s32.totalorder %s86, %s100
      %p102 = scmp.eq.s32.totalorder %s22, 0
      %p103 = por %p101, %p102
      %s104 = ssub.s32 %s23, %s35
      %s105 = ssub.s32 %s24, %s31
      %s106 = sor.u32 %s104, %s105
      %p107 = scmp.eq.s32.totalorder %s106, 0
      %s109 = sadd.s32 %s108, 1
      %s110 = scalar_select %p107, %s108, %s109
      %p113 = pneg %p107
      %p114 = scmp.eq.s32.totalorder %s16, 1
      %p115 = por %p113, %p114
      %p116 = scmp.ne.s32.totalorder %s108, %s111
      %p117 = scmp.eq.s32.totalorder %s16, 0
      %p118 = por %p116, %p117
      %p119 = scmp.ne.s32.totalorder %s108, %s111
      %p120 = scmp.eq.s32.totalorder %s21, 1
      %p121 = por %p119, %p120
      %p122 = scmp.ne.s32.totalorder %s111, %s112
      %p123 = scmp.eq.s32.totalorder %s21, 0
      %p124 = por %p122, %p123
      %p125 = scmp.ne.s32.totalorder %s111, %s112
      %p126 = scmp.eq.s32.totalorder %s22, 1
      %p127 = por %p125, %p126
      %p129 = scmp.ne.s32.totalorder %s112, %s128
      %p130 = scmp.eq.s32.totalorder %s22, 0
      %p131 = por %p129, %p130
      %p132 = scmp.le.s32.totalorder 1, %s16
      %p133 = scmp.lt.s32.totalorder %s16, 3
      %p134 = pnand %p132, %p133
      %p135 = pneg %p134
      // Predicated region
      $region9: #{tpu_custom_call.1} parent=5 // pred_check
        _
      $region10: #{tpu_custom_call.1} parent=5 // pred_check_branch
        %137 = sbr.rel (%p134) target = $region12
      $region11: #{tpu_custom_call.1} parent=5 // pred_region
        %s138 = ssub.s32 %s16, 1
        // Predicated region
        $region13: #{tpu_custom_call.1} parent=11 // pred_check
          %p139 = pneg %p75
        $region14: #{tpu_custom_call.1} parent=11 // pred_check_branch
          %141 = sbr.rel (%p139) target = $region16
        $region15: #{tpu_custom_call.1} parent=11 // pred_region
          %s143 = ssub.s32 1024, 1024
          %144 = vsyncadd [#allocation8], %s143
          %s145 = sshll.u32 [#allocation7], 4
          %s146 = int_to_ptr.vmem [resolvable:$true] %s145
          %151 = dma.hbm_to_vmem [thread:$0]  %s1, 1024, %s146, [#allocation8], 64, 64, 4
        $region16: #{tpu_custom_call.1} parent=11 // pred_fallthru
          _
        // Predicated region
        $region17: #{tpu_custom_call.1} parent=11 // pred_check
          %p152 = pneg %p96
        $region18: #{tpu_custom_call.1} parent=11 // pred_check_branch
          %154 = sbr.rel (%p152) target = $region20
        $region19: #{tpu_custom_call.1} parent=11 // pred_region
          %s156 = ssub.s32 1024, 1024
          %157 = vsyncadd [#allocation8], %s156
          %s158 = sshll.u32 [#allocation9], 4
          %s159 = int_to_ptr.vmem [resolvable:$true] %s158
          %164 = dma.hbm_to_vmem [thread:$0]  %s2, 1024, %s159, [#allocation8], 64, 64, 4
        $region20: #{tpu_custom_call.1} parent=11 // pred_fallthru
          _
      $region12: #{tpu_custom_call.1} parent=5 // pred_fallthru
        _
      %p165 = scmp.lt.s32.totalorder %s16, 2
      // Predicated region
      $region21: #{tpu_custom_call.1} parent=5 // pred_check
        %p166 = pneg %p165
      $region22: #{tpu_custom_call.1} parent=5 // pred_check_branch
        %168 = sbr.rel (%p166) target = $region24
      $region23: #{tpu_custom_call.1} parent=5 // pred_region
        // Predicated region
        $region25: #{tpu_custom_call.1} parent=23 // pred_check
          %p169 = pneg %p48
        $region26: #{tpu_custom_call.1} parent=23 // pred_check_branch
          %171 = sbr.rel (%p169) target = $region28
        $region27: #{tpu_custom_call.1} parent=23 // pred_region
          %s172 = sand.u32 %s38, 1
          %s173 = scalar_lea.sflag [#allocation5], %s172
          %s174 = sand.u32 %s38, 1
          %s175 = smul.addr %s174, 64
          %s176 = scalar_lea.vmem [#allocation4], %s175
          %s178 = ssub.s32 1024, 1024
          %179 = vsyncadd %s173, %s178
          %s180 = smul.addr %s23, 16
          %s181 = smul.addr %s180, 64
          %s182 = scalar_lea.hbm %s0, %s181
          %s183 = sshll.u32 %s176, 4
          %s184 = int_to_ptr.vmem [resolvable:$true] %s183
          %189 = dma.hbm_to_vmem [thread:$0]  %s182, 1024, %s184, %s173, 64, 64, 4
        $region28: #{tpu_custom_call.1} parent=23 // pred_fallthru
          _
      $region24: #{tpu_custom_call.1} parent=5 // pred_fallthru
        _
      %p190 = scmp.le.s32.totalorder 1, %s16
      %p191 = scmp.lt.s32.totalorder %s16, 3
      %p192 = pnand %p190, %p191
      %p193 = pneg %p192
      // Predicated region
      $region29: #{tpu_custom_call.1} parent=5 // pred_check
        _
      $region30: #{tpu_custom_call.1} parent=5 // pred_check_branch
        %195 = sbr.rel (%p192) target = $region32
      $region31: #{tpu_custom_call.1} parent=5 // pred_region
        %s196 = ssub.s32 %s16, 1
        %s197 = sand.u32 %s41, 1
        %s198 = scalar_lea.sflag [#allocation5], %s197
        %s199 = sand.u32 %s41, 1
        %s200 = smul.addr %s199, 64
        %s201 = scalar_lea.vmem [#allocation4], %s200
        // Predicated region
        $region33: #{tpu_custom_call.1} parent=31 // pred_check
          %p202 = pneg %p54
        $region34: #{tpu_custom_call.1} parent=31 // pred_check_branch
          %204 = sbr.rel (%p202) target = $region36
        $region35: #{tpu_custom_call.1} parent=31 // pred_region
          %205 = dma.done %s198, 1024
        $region36: #{tpu_custom_call.1} parent=31 // pred_fallthru
          _
        // Predicated region
        $region37: #{tpu_custom_call.1} parent=31 // pred_check
          %p206 = pneg %p75
        $region38: #{tpu_custom_call.1} parent=31 // pred_check_branch
          %208 = sbr.rel (%p206) target = $region40
        $region39: #{tpu_custom_call.1} parent=31 // pred_region
          %209 = dma.done [#allocation8], 1024
        $region40: #{tpu_custom_call.1} parent=31 // pred_fallthru
          _
        // Predicated region
        $region41: #{tpu_custom_call.1} parent=31 // pred_check
          %p210 = pneg %p96
        $region42: #{tpu_custom_call.1} parent=31 // pred_check_branch
          %212 = sbr.rel (%p210) target = $region44
        $region43: #{tpu_custom_call.1} parent=31 // pred_region
          %213 = dma.done [#allocation8], 1024
        $region44: #{tpu_custom_call.1} parent=31 // pred_fallthru
          _
        %s214 = sand.u32 %s41, 1
        %s215 = scalar_lea.sflag [#allocation5], %s214
        %s216 = sand.u32 %s41, 1
        %s217 = smul.addr %s216, 64
        %s218 = scalar_lea.vmem [#allocation4], %s217
        %p219 = pneg %p54
        %p220 = pneg %p51
        %p221 = pneg %p75
        %p222 = pneg %p72
        %p223 = pneg %p96
        %p224 = pneg %p93
        %p225 = pneg %p124
        %p226 = pneg %p121
        %s227 = sand.u32 %s111, 1
        %s228 = scalar_lea.sflag [#allocation6], %s227
        %s229 = sand.u32 %s111, 1
        %s230 = smul.addr %s229, 128
        %s231 = scalar_lea.vmem [#allocation10], %s230
        %s232 = smul.u32 16, %s26
        %p234 = scmp.eq.s32.totalorder %s26, 0
        // Predicated region
        $region45: #{tpu_custom_call.1} parent=31 // pred_check
          %p235 = pneg %p234
        $region46: #{tpu_custom_call.1} parent=31 // pred_check_branch
          %237 = sbr.rel (%p235) target = $region48
        $region47: #{tpu_custom_call.1} parent=31 // pred_region
          %v238 = vld [vmem:[%s201] sm:$0xf]
          %v239 = vld [vmem:[%s201 + $0x4] sm:$0xf]
          %v240 = vld [vmem:[%s201 + $0x8] sm:$0xf]
          %v241 = vld [vmem:[%s201 + $0xc] sm:$0xf]
          %v242 = vld [vmem:[%s201 + $0x10] sm:$0xf]
          %v243 = vld [vmem:[%s201 + $0x14] sm:$0xf]
          %v244 = vld [vmem:[%s201 + $0x18] sm:$0xf]
          %v245 = vld [vmem:[%s201 + $0x1c] sm:$0xf]
          %v246 = vld [vmem:[%s201 + $0x20] sm:$0xf]
          %v247 = vld [vmem:[%s201 + $0x24] sm:$0xf]
          %v248 = vld [vmem:[%s201 + $0x28] sm:$0xf]
          %v249 = vld [vmem:[%s201 + $0x2c] sm:$0xf]
          %v250 = vld [vmem:[%s201 + $0x30] sm:$0xf]
          %v251 = vld [vmem:[%s201 + $0x34] sm:$0xf]
          %v252 = vld [vmem:[%s201 + $0x38] sm:$0xf]
          %v253 = vld [vmem:[%s201 + $0x3c] sm:$0xf]
          %v254 = vld [vmem:[#allocation7] sm:$0xf]
          %v255 = vld [vmem:[#allocation7 + $0x4] sm:$0xf]
          %v256 = vld [vmem:[#allocation7 + $0x8] sm:$0xf]
          %v257 = vld [vmem:[#allocation7 + $0xc] sm:$0xf]
          %v258 = vld [vmem:[#allocation7 + $0x10] sm:$0xf]
          %v259 = vld [vmem:[#allocation7 + $0x14] sm:$0xf]
          %v260 = vld [vmem:[#allocation7 + $0x18] sm:$0xf]
          %v261 = vld [vmem:[#allocation7 + $0x1c] sm:$0xf]
          %v262 = vld [vmem:[#allocation7 + $0x20] sm:$0xf]
          %v263 = vld [vmem:[#allocation7 + $0x24] sm:$0xf]
          %v264 = vld [vmem:[#allocation7 + $0x28] sm:$0xf]
          %v265 = vld [vmem:[#allocation7 + $0x2c] sm:$0xf]
          %v266 = vld [vmem:[#allocation7 + $0x30] sm:$0xf]
          %v267 = vld [vmem:[#allocation7 + $0x34] sm:$0xf]
          %v268 = vld [vmem:[#allocation7 + $0x38] sm:$0xf]
          %v269 = vld [vmem:[#allocation7 + $0x3c] sm:$0xf]
          %v286 = vunpack.c.l.b16 %v238
          %v287 = vunpack.c.l.b16 %v239
          %v288 = vunpack.c.l.b16 %v240
          %v289 = vunpack.c.l.b16 %v241
          %v290 = vunpack.c.l.b16 %v242
          %v291 = vunpack.c.l.b16 %v243
          %v292 = vunpack.c.l.b16 %v244
          %v293 = vunpack.c.l.b16 %v245
          %v294 = vunpack.c.l.b16 %v246
          %v295 = vunpack.c.l.b16 %v247
          %v296 = vunpack.c.l.b16 %v248
          %v297 = vunpack.c.l.b16 %v249
          %v298 = vunpack.c.l.b16 %v250
          %v299 = vunpack.c.l.b16 %v251
          %v300 = vunpack.c.l.b16 %v252
          %v301 = vunpack.c.l.b16 %v253
          %v302 = vpack.c.b16 %v287, %v286
          %v303 = vpack.c.b16 %v289, %v288
          %v304 = vpack.c.b16 %v291, %v290
          %v305 = vpack.c.b16 %v293, %v292
          %v306 = vpack.c.b16 %v295, %v294
          %v307 = vpack.c.b16 %v297, %v296
          %v308 = vpack.c.b16 %v299, %v298
          %v309 = vpack.c.b16 %v301, %v300
          %v334 = vunpack.c.l.b16 %v254
          %v335 = vunpack.c.l.b16 %v255
          %v336 = vunpack.c.l.b16 %v256
          %v337 = vunpack.c.l.b16 %v257
          %v338 = vunpack.c.l.b16 %v258
          %v339 = vunpack.c.l.b16 %v259
          %v340 = vunpack.c.l.b16 %v260
          %v341 = vunpack.c.l.b16 %v261
          %v342 = vunpack.c.l.b16 %v262
          %v343 = vunpack.c.l.b16 %v263
          %v344 = vunpack.c.l.b16 %v264
          %v345 = vunpack.c.l.b16 %v265
          %v346 = vunpack.c.l.b16 %v266
          %v347 = vunpack.c.l.b16 %v267
          %v348 = vunpack.c.l.b16 %v268
          %v349 = vunpack.c.l.b16 %v269
          %v350 = vpack.c.b16 %v335, %v334
          %v351 = vpack.c.b16 %v337, %v336
          %v352 = vpack.c.b16 %v339, %v338
          %v353 = vpack.c.b16 %v341, %v340
          %v354 = vpack.c.b16 %v343, %v342
          %v355 = vpack.c.b16 %v345, %v344
          %v356 = vpack.c.b16 %v347, %v346
          %v357 = vpack.c.b16 %v349, %v348
          %366 = vmatprep.subr.bf16.mxu0 0
          %367 = vmatpush1.bf16.msra.mxu0 %v357
          %368 = vmatprep.subr.bf16.mxu0 0
          %369 = vmatpush1.bf16.msra.mxu0 %v356
          %370 = vmatprep.subr.bf16.mxu0 0
          %371 = vmatpush1.bf16.msra.mxu0 %v355
          %372 = vmatprep.subr.bf16.mxu0 0
          %373 = vmatpush1.bf16.msra.mxu0 %v354
          %374 = vmatprep.subr.bf16.mxu0 0
          %375 = vmatpush1.bf16.msra.mxu0 %v353
          %376 = vmatprep.subr.bf16.mxu0 0
          %377 = vmatpush1.bf16.msra.mxu0 %v352
          %378 = vmatprep.subr.bf16.mxu0 0
          %379 = vmatpush1.bf16.msra.mxu0 %v351
          %380 = vmatprep.subr.bf16.mxu0 0
          %381 = vmatpush1.bf16.msra.mxu0 %v350
          %382 = vmatprep.subr.bf16.mxu0 0
          %383 = vmatpush2.bf16.msra.mxu0 0
          %384 = vmatprep.subr.bf16.mxu0 0
          %385 = vmatpush2.bf16.msra.mxu0 0
          %386 = vmatprep.subr.bf16.mxu0 0
          %387 = vmatpush2.bf16.msra.mxu0 0
          %388 = vmatprep.subr.bf16.mxu0 0
          %389 = vmatpush2.bf16.msra.mxu0 0
          %390 = vmatprep.subr.bf16.mxu0 0
          %391 = vmatpush2.bf16.msra.mxu0 0
          %392 = vmatprep.subr.bf16.mxu0 0
          %393 = vmatpush2.bf16.msra.mxu0 0
          %394 = vmatprep.subr.bf16.mxu0 0
          %395 = vmatpush2.bf16.msra.mxu0 0
          %396 = vmatprep.subr.bf16.mxu0 0
          %397 = vmatpush2.bf16.msra.mxu0 0
          %398 = vmatprep.mubr.bf16.mxu0 0
          %399 = vmatmul.mubr.bf16.gmra.mxu0 %v302
          %v400 = vpop.f32.mrf.mxu0
          %v401 = vadd.f32 0.0, %v400
          %v402 = vpop.f32.mrf.mxu0
          %v403 = vpop.f32.mrf.mxu0
          %v404 = vadd.f32 0.0, %v403
          %v405 = vpop.f32.mrf.mxu0
          %406 = vmatprep.mubr.bf16.mxu0 0
          %407 = vmatmul.mubr.bf16.gmra.mxu0 %v303
          %v408 = vpop.f32.mrf.mxu0
          %v409 = vadd.f32 0.0, %v408
          %v410 = vpop.f32.mrf.mxu0
          %v411 = vpop.f32.mrf.mxu0
          %v412 = vadd.f32 0.0, %v411
          %v413 = vpop.f32.mrf.mxu0
          %414 = vmatprep.mubr.bf16.mxu0 0
          %415 = vmatmul.mubr.bf16.gmra.mxu0 %v304
          %v416 = vpop.f32.mrf.mxu0
          %v417 = vadd.f32 0.0, %v416
          %v418 = vpop.f32.mrf.mxu0
          %v419 = vpop.f32.mrf.mxu0
          %v420 = vadd.f32 0.0, %v419
          %v421 = vpop.f32.mrf.mxu0
          %422 = vmatprep.mubr.bf16.mxu0 0
          %423 = vmatmul.mubr.bf16.gmra.mxu0 %v305
          %v424 = vpop.f32.mrf.mxu0
          %v425 = vadd.f32 0.0, %v424
          %v426 = vpop.f32.mrf.mxu0
          %v427 = vpop.f32.mrf.mxu0
          %v428 = vadd.f32 0.0, %v427
          %v429 = vpop.f32.mrf.mxu0
          %430 = vmatprep.mubr.bf16.mxu0 0
          %431 = vmatmul.mubr.bf16.gmra.mxu0 %v306
          %v432 = vpop.f32.mrf.mxu0
          %v433 = vadd.f32 0.0, %v432
          %v434 = vpop.f32.mrf.mxu0
          %v435 = vpop.f32.mrf.mxu0
          %v436 = vadd.f32 0.0, %v435
          %v437 = vpop.f32.mrf.mxu0
          %438 = vmatprep.mubr.bf16.mxu0 0
          %439 = vmatmul.mubr.bf16.gmra.mxu0 %v307
          %v440 = vpop.f32.mrf.mxu0
          %v441 = vadd.f32 0.0, %v440
          %v442 = vpop.f32.mrf.mxu0
          %v443 = vpop.f32.mrf.mxu0
          %v444 = vadd.f32 0.0, %v443
          %v445 = vpop.f32.mrf.mxu0
          %446 = vmatprep.mubr.bf16.mxu0 0
          %447 = vmatmul.mubr.bf16.gmra.mxu0 %v308
          %v448 = vpop.f32.mrf.mxu0
          %v449 = vadd.f32 0.0, %v448
          %v450 = vpop.f32.mrf.mxu0
          %v451 = vpop.f32.mrf.mxu0
          %v452 = vadd.f32 0.0, %v451
          %v453 = vpop.f32.mrf.mxu0
          %454 = vmatprep.mubr.bf16.mxu0 0
          %455 = vmatmul.mubr.bf16.gmra.mxu0 %v309
          %v456 = vpop.f32.mrf.mxu0
          %v457 = vadd.f32 0.0, %v456
          %v458 = vpop.f32.mrf.mxu0
          %v459 = vpop.f32.mrf.mxu0
          %v460 = vadd.f32 0.0, %v459
          %v461 = vpop.f32.mrf.mxu0
          %462 = vdwg.mxu0
          %463 = vst [vmem:[#allocation2] sm:$0xff] %v401
          %464 = vst [vmem:[#allocation2 + $0x8] sm:$0xff] %v404
          %465 = vst [vmem:[#allocation2 + $0x10] sm:$0xff] %v409
          %466 = vst [vmem:[#allocation2 + $0x18] sm:$0xff] %v412
          %467 = vst [vmem:[#allocation2 + $0x20] sm:$0xff] %v417
          %468 = vst [vmem:[#allocation2 + $0x28] sm:$0xff] %v420
          %469 = vst [vmem:[#allocation2 + $0x30] sm:$0xff] %v425
          %470 = vst [vmem:[#allocation2 + $0x38] sm:$0xff] %v428
          %471 = vst [vmem:[#allocation2 + $0x40] sm:$0xff] %v433
          %472 = vst [vmem:[#allocation2 + $0x48] sm:$0xff] %v436
          %473 = vst [vmem:[#allocation2 + $0x50] sm:$0xff] %v441
          %474 = vst [vmem:[#allocation2 + $0x58] sm:$0xff] %v444
          %475 = vst [vmem:[#allocation2 + $0x60] sm:$0xff] %v449
          %476 = vst [vmem:[#allocation2 + $0x68] sm:$0xff] %v452
          %477 = vst [vmem:[#allocation2 + $0x70] sm:$0xff] %v457
          %478 = vst [vmem:[#allocation2 + $0x78] sm:$0xff] %v460
          %v479 = vmax.f32 %v401, %v417
          %v480 = vmax.f32 %v404, %v420
          %v481 = vmax.f32 %v409, %v425
          %v482 = vmax.f32 %v412, %v428
          %v483 = vmax.f32 %v479, %v433
          %v484 = vmax.f32 %v480, %v436
          %v485 = vmax.f32 %v481, %v441
          %v486 = vmax.f32 %v482, %v444
          %v487 = vmax.f32 %v483, %v449
          %v488 = vmax.f32 %v484, %v452
          %v489 = vmax.f32 %v485, %v457
          %v490 = vmax.f32 %v486, %v460
          %v491 = vmax.f32 %v487, %v488
          %v492 = vmax.f32 %v489, %v490
          %v493 = vmax.f32 %v491, %v492
          %v494 = vrot.slane %v493, 4
          %v495 = vmax.f32 %v493, %v494
          %v496 = vrot.slane %v495, 2
          %v497 = vmax.f32 %v495, %v496
          %v498 = vrot.slane %v497, 1
          %v499 = vmax.f32 %v497, %v498
          %v500 = vld [vmem:[#allocation2] sm:$0xff]
          %v501 = vld [vmem:[#allocation2 + $0x8] sm:$0xff]
          %v502 = vld [vmem:[#allocation2 + $0x10] sm:$0xff]
          %v503 = vld [vmem:[#allocation2 + $0x18] sm:$0xff]
          %v504 = vld [vmem:[#allocation2 + $0x20] sm:$0xff]
          %v505 = vld [vmem:[#allocation2 + $0x28] sm:$0xff]
          %v506 = vld [vmem:[#allocation2 + $0x30] sm:$0xff]
          %v507 = vld [vmem:[#allocation2 + $0x38] sm:$0xff]
          %v508 = vld [vmem:[#allocation2 + $0x40] sm:$0xff]
          %v509 = vld [vmem:[#allocation2 + $0x48] sm:$0xff]
          %v510 = vld [vmem:[#allocation2 + $0x50] sm:$0xff]
          %v511 = vld [vmem:[#allocation2 + $0x58] sm:$0xff]
          %v512 = vld [vmem:[#allocation2 + $0x60] sm:$0xff]
          %v513 = vld [vmem:[#allocation2 + $0x68] sm:$0xff]
          %v514 = vld [vmem:[#allocation2 + $0x70] sm:$0xff]
          %v515 = vld [vmem:[#allocation2 + $0x78] sm:$0xff]
          %v516 = vsub.f32 %v500, %v499
          %v517 = vsub.f32 %v501, %v499
          %v518 = vsub.f32 %v502, %v499
          %v519 = vsub.f32 %v503, %v499
          %v520 = vsub.f32 %v504, %v499
          %v521 = vsub.f32 %v505, %v499
          %v522 = vsub.f32 %v506, %v499
          %v523 = vsub.f32 %v507, %v499
          %v524 = vsub.f32 %v508, %v499
          %v525 = vsub.f32 %v509, %v499
          %v526 = vsub.f32 %v510, %v499
          %v527 = vsub.f32 %v511, %v499
          %v528 = vsub.f32 %v512, %v499
          %v529 = vsub.f32 %v513, %v499
          %v530 = vsub.f32 %v514, %v499
          %v531 = vsub.f32 %v515, %v499
          %v532 = vmul.f32 %v516, 1.442695
          %v533 = vpow.pop %v532
          %v534 = vmul.f32 %v517, 1.442695
          %v535 = vpow.pop %v534
          %v536 = vmul.f32 %v518, 1.442695
          %v537 = vpow.pop %v536
          %v538 = vmul.f32 %v519, 1.442695
          %v539 = vpow.pop %v538
          %v540 = vmul.f32 %v520, 1.442695
          %v541 = vpow.pop %v540
          %v542 = vmul.f32 %v521, 1.442695
          %v543 = vpow.pop %v542
          %v544 = vmul.f32 %v522, 1.442695
          %v545 = vpow.pop %v544
          %v546 = vmul.f32 %v523, 1.442695
          %v547 = vpow.pop %v546
          %v548 = vmul.f32 %v524, 1.442695
          %v549 = vpow.pop %v548
          %v550 = vmul.f32 %v525, 1.442695
          %v551 = vpow.pop %v550
          %v552 = vmul.f32 %v526, 1.442695
          %v553 = vpow.pop %v552
          %v554 = vmul.f32 %v527, 1.442695
          %v555 = vpow.pop %v554
          %v556 = vmul.f32 %v528, 1.442695
          %v557 = vpow.pop %v556
          %v558 = vmul.f32 %v529, 1.442695
          %v559 = vpow.pop %v558
          %v560 = vmul.f32 %v530, 1.442695
          %v561 = vpow.pop %v560
          %v562 = vmul.f32 %v531, 1.442695
          %v563 = vpow.pop %v562
          %v564 = vlaneseq
          %v565 = vshrl.u32 %v564, 7
          %v566 = vadd.s32 %v565, 8
          %v567 = vadd.s32 %v565, 16
          %v568 = vadd.s32 %v565, 24
          %v569 = vadd.s32 %v565, 32
          %v570 = vadd.s32 %v565, 40
          %v571 = vadd.s32 %v565, 48
          %v572 = vadd.s32 %v565, 56
          %v573 = vadd.s32 %v565, 64
          %v574 = vadd.s32 %v565, 72
          %v575 = vadd.s32 %v565, 80
          %v576 = vadd.s32 %v565, 88
          %v577 = vadd.s32 %v565, 96
          %v578 = vadd.s32 %v565, 104
          %v579 = vadd.s32 %v565, 112
          %v580 = vadd.s32 %v565, 120
          %vm581 = vcmp.lt.s32.totalorder %v565, 8
          %vm582 = vcmp.lt.s32.totalorder %v566, 8
          %vm583 = vcmp.lt.s32.totalorder %v567, 8
          %vm584 = vcmp.lt.s32.totalorder %v568, 8
          %vm585 = vcmp.lt.s32.totalorder %v569, 8
          %vm586 = vcmp.lt.s32.totalorder %v570, 8
          %vm587 = vcmp.lt.s32.totalorder %v571, 8
          %vm588 = vcmp.lt.s32.totalorder %v572, 8
          %vm589 = vcmp.lt.s32.totalorder %v573, 8
          %vm590 = vcmp.lt.s32.totalorder %v574, 8
          %vm591 = vcmp.lt.s32.totalorder %v575, 8
          %vm592 = vcmp.lt.s32.totalorder %v576, 8
          %vm593 = vcmp.lt.s32.totalorder %v577, 8
          %vm594 = vcmp.lt.s32.totalorder %v578, 8
          %vm595 = vcmp.lt.s32.totalorder %v579, 8
          %vm596 = vcmp.lt.s32.totalorder %v580, 8
          %v597 = vsel %vm581, %v533, 0.0
          %v598 = vsel %vm582, %v535, 0.0
          %v599 = vsel %vm583, %v537, 0.0
          %v600 = vsel %vm584, %v539, 0.0
          %v601 = vsel %vm585, %v541, 0.0
          %v602 = vsel %vm586, %v543, 0.0
          %v603 = vsel %vm587, %v545, 0.0
          %v604 = vsel %vm588, %v547, 0.0
          %v605 = vsel %vm589, %v549, 0.0
          %v606 = vsel %vm590, %v551, 0.0
          %v607 = vsel %vm591, %v553, 0.0
          %v608 = vsel %vm592, %v555, 0.0
          %v609 = vsel %vm593, %v557, 0.0
          %v610 = vsel %vm594, %v559, 0.0
          %v611 = vsel %vm595, %v561, 0.0
          %v612 = vsel %vm596, %v563, 0.0
          %613 = vst [vmem:[#allocation2] sm:$0xff] %v597
          %614 = vst [vmem:[#allocation2 + $0x8] sm:$0xff] %v598
          %615 = vst [vmem:[#allocation2 + $0x10] sm:$0xff] %v599
          %616 = vst [vmem:[#allocation2 + $0x18] sm:$0xff] %v600
          %617 = vst [vmem:[#allocation2 + $0x20] sm:$0xff] %v601
          %618 = vst [vmem:[#allocation2 + $0x28] sm:$0xff] %v602
          %619 = vst [vmem:[#allocation2 + $0x30] sm:$0xff] %v603
          %620 = vst [vmem:[#allocation2 + $0x38] sm:$0xff] %v604
          %621 = vst [vmem:[#allocation2 + $0x40] sm:$0xff] %v605
          %622 = vst [vmem:[#allocation2 + $0x48] sm:$0xff] %v606
          %623 = vst [vmem:[#allocation2 + $0x50] sm:$0xff] %v607
          %624 = vst [vmem:[#allocation2 + $0x58] sm:$0xff] %v608
          %625 = vst [vmem:[#allocation2 + $0x60] sm:$0xff] %v609
          %626 = vst [vmem:[#allocation2 + $0x68] sm:$0xff] %v610
          %627 = vst [vmem:[#allocation2 + $0x70] sm:$0xff] %v611
          %628 = vst [vmem:[#allocation2 + $0x78] sm:$0xff] %v612
          %v629 = vadd.f32 %v597, %v598
          %v630 = vadd.f32 %v629, %v599
          %v631 = vadd.f32 %v630, %v600
          %v632 = vadd.f32 %v631, %v601
          %v633 = vadd.f32 %v632, %v602
          %v634 = vadd.f32 %v633, %v603
          %v635 = vadd.f32 %v634, %v604
          %v636 = vadd.f32 %v635, %v605
          %v637 = vadd.f32 %v636, %v606
          %v638 = vadd.f32 %v637, %v607
          %v639 = vadd.f32 %v638, %v608
          %v640 = vadd.f32 %v639, %v609
          %v641 = vadd.f32 %v640, %v610
          %v642 = vadd.f32 %v641, %v611
          %v643 = vadd.f32 %v642, %v612
          %v644 = vrot.slane %v643, 4
          %v645 = vadd.f32 %v643, %v644
          %v646 = vrot.slane %v645, 2
          %v647 = vadd.f32 %v645, %v646
          %v648 = vrot.slane %v647, 1
          %v649 = vadd.f32 %v647, %v648
          %v650 = vadd.f32 %v649, 0.0
          %v651 = vrcp.pop %v650
          %v652 = vmul.f32 1.0, %v651
          %v653 = vlaneseq
          %v654 = vand.u32 %v653, 127
          %vm655 = vcmp.lt.s32.totalorder %v654, 64
          %v656 = vsel %vm655, %v652, 0.0
          %657 = vst [vmem:[#allocation3] sm:$0x1] %v656
        $region48: #{tpu_custom_call.1} parent=31 // pred_fallthru
          _
        %s658 = smul.u32 %s26, 128
        %s659 = scalar_lea.vmem [#allocation2], %s658
        %v660 = vld [vmem:[%s659] sm:$0xff]
        %v661 = vld [vmem:[%s659 + $0x8] sm:$0xff]
        %v662 = vld [vmem:[%s659 + $0x10] sm:$0xff]
        %v663 = vld [vmem:[%s659 + $0x18] sm:$0xff]
        %v664 = vld [vmem:[%s659 + $0x20] sm:$0xff]
        %v665 = vld [vmem:[%s659 + $0x28] sm:$0xff]
        %v666 = vld [vmem:[%s659 + $0x30] sm:$0xff]
        %v667 = vld [vmem:[%s659 + $0x38] sm:$0xff]
        %v668 = vld [vmem:[%s659 + $0x40] sm:$0xff]
        %v669 = vld [vmem:[%s659 + $0x48] sm:$0xff]
        %v670 = vld [vmem:[%s659 + $0x50] sm:$0xff]
        %v671 = vld [vmem:[%s659 + $0x58] sm:$0xff]
        %v672 = vld [vmem:[%s659 + $0x60] sm:$0xff]
        %v673 = vld [vmem:[%s659 + $0x68] sm:$0xff]
        %v674 = vld [vmem:[%s659 + $0x70] sm:$0xff]
        %v675 = vld [vmem:[%s659 + $0x78] sm:$0xff]
        %v676 = vld [vmem:[#allocation3] sm:$0x1]
        %v678 = vlaneseq
        %v679 = vshrl.u32 %v678, 7
        %v680 = vsub.s32 0, %v679
        %v681 = vrot.slane %v676, %v680
        %v683 = vmul.f32 %v660, %v681
        %v684 = vmul.f32 %v661, %v681
        %v685 = vmul.f32 %v662, %v681
        %v686 = vmul.f32 %v663, %v681
        %v687 = vmul.f32 %v664, %v681
        %v688 = vmul.f32 %v665, %v681
        %v689 = vmul.f32 %v666, %v681
        %v690 = vmul.f32 %v667, %v681
        %v691 = vmul.f32 %v668, %v681
        %v692 = vmul.f32 %v669, %v681
        %v693 = vmul.f32 %v670, %v681
        %v694 = vmul.f32 %v671, %v681
        %v695 = vmul.f32 %v672, %v681
        %v696 = vmul.f32 %v673, %v681
        %v697 = vmul.f32 %v674, %v681
        %v698 = vmul.f32 %v675, %v681
        %699 = vadd.xlane.f32.xlu0 %v683
        %v700 = vpop.xlane.xlu0 %699
        %701 = vadd.xlane.f32.xlu0 %v684
        %v702 = vpop.xlane.xlu0 %701
        %703 = vadd.xlane.f32.xlu0 %v685
        %v704 = vpop.xlane.xlu0 %703
        %705 = vadd.xlane.f32.xlu0 %v686
        %v706 = vpop.xlane.xlu0 %705
        %707 = vadd.xlane.f32.xlu0 %v687
        %v708 = vpop.xlane.xlu0 %707
        %709 = vadd.xlane.f32.xlu0 %v688
        %v710 = vpop.xlane.xlu0 %709
        %711 = vadd.xlane.f32.xlu0 %v689
        %v712 = vpop.xlane.xlu0 %711
        %713 = vadd.xlane.f32.xlu0 %v690
        %v714 = vpop.xlane.xlu0 %713
        %715 = vadd.xlane.f32.xlu0 %v691
        %v716 = vpop.xlane.xlu0 %715
        %717 = vadd.xlane.f32.xlu0 %v692
        %v718 = vpop.xlane.xlu0 %717
        %719 = vadd.xlane.f32.xlu0 %v693
        %v720 = vpop.xlane.xlu0 %719
        %721 = vadd.xlane.f32.xlu0 %v694
        %v722 = vpop.xlane.xlu0 %721
        %723 = vadd.xlane.f32.xlu0 %v695
        %v724 = vpop.xlane.xlu0 %723
        %725 = vadd.xlane.f32.xlu0 %v696
        %v726 = vpop.xlane.xlu0 %725
        %727 = vadd.xlane.f32.xlu0 %v697
        %v728 = vpop.xlane.xlu0 %727
        %729 = vadd.xlane.f32.xlu0 %v698
        %v730 = vpop.xlane.xlu0 %729
        %v731 = vmax.f32 %v700, 1e-30
        %v732 = vmax.f32 %v702, 1e-30
        %v733 = vmax.f32 %v704, 1e-30
        %v734 = vmax.f32 %v706, 1e-30
        %v735 = vmax.f32 %v708, 1e-30
        %v736 = vmax.f32 %v710, 1e-30
        %v737 = vmax.f32 %v712, 1e-30
        %v738 = vmax.f32 %v714, 1e-30
        %v739 = vmax.f32 %v716, 1e-30
        %v740 = vmax.f32 %v718, 1e-30
        %v741 = vmax.f32 %v720, 1e-30
        %v742 = vmax.f32 %v722, 1e-30
        %v743 = vmax.f32 %v724, 1e-30
        %v744 = vmax.f32 %v726, 1e-30
        %v745 = vmax.f32 %v728, 1e-30
        %v746 = vmax.f32 %v730, 1e-30
        %v747 = vrcp.pop %v731
        %v748 = vmul.f32 1.0, %v747
        %v749 = vrcp.pop %v732
        %v750 = vmul.f32 1.0, %v749
        %v751 = vrcp.pop %v733
        %v752 = vmul.f32 1.0, %v751
        %v753 = vrcp.pop %v734
        %v754 = vmul.f32 1.0, %v753
        %v755 = vrcp.pop %v735
        %v756 = vmul.f32 1.0, %v755
        %v757 = vrcp.pop %v736
        %v758 = vmul.f32 1.0, %v757
        %v759 = vrcp.pop %v737
        %v760 = vmul.f32 1.0, %v759
        %v761 = vrcp.pop %v738
        %v762 = vmul.f32 1.0, %v761
        %v763 = vrcp.pop %v739
        %v764 = vmul.f32 1.0, %v763
        %v765 = vrcp.pop %v740
        %v766 = vmul.f32 1.0, %v765
        %v767 = vrcp.pop %v741
        %v768 = vmul.f32 1.0, %v767
        %v769 = vrcp.pop %v742
        %v770 = vmul.f32 1.0, %v769
        %v771 = vrcp.pop %v743
        %v772 = vmul.f32 1.0, %v771
        %v773 = vrcp.pop %v744
        %v774 = vmul.f32 1.0, %v773
        %v775 = vrcp.pop %v745
        %v776 = vmul.f32 1.0, %v775
        %v777 = vrcp.pop %v746
        %v778 = vmul.f32 1.0, %v777
        %v779 = vmul.f32 %v683, %v748
        %v780 = vmul.f32 %v684, %v750
        %v781 = vmul.f32 %v685, %v752
        %v782 = vmul.f32 %v686, %v754
        %v783 = vmul.f32 %v687, %v756
        %v784 = vmul.f32 %v688, %v758
        %v785 = vmul.f32 %v689, %v760
        %v786 = vmul.f32 %v690, %v762
        %v787 = vmul.f32 %v691, %v764
        %v788 = vmul.f32 %v692, %v766
        %v789 = vmul.f32 %v693, %v768
        %v790 = vmul.f32 %v694, %v770
        %v791 = vmul.f32 %v695, %v772
        %v792 = vmul.f32 %v696, %v774
        %v793 = vmul.f32 %v697, %v776
        %v794 = vmul.f32 %v698, %v778
        %v795 = vpack.c.bf16 %v780, %v779
        %v796 = vpack.c.bf16 %v782, %v781
        %v797 = vpack.c.bf16 %v784, %v783
        %v798 = vpack.c.bf16 %v786, %v785
        %v799 = vpack.c.bf16 %v788, %v787
        %v800 = vpack.c.bf16 %v790, %v789
        %v801 = vpack.c.bf16 %v792, %v791
        %v802 = vpack.c.bf16 %v794, %v793
        %v803 = vld [vmem:[#allocation9] sm:$0xf]
        %v804 = vld [vmem:[#allocation9 + $0x4] sm:$0xf]
        %v805 = vld [vmem:[#allocation9 + $0x8] sm:$0xf]
        %v806 = vld [vmem:[#allocation9 + $0xc] sm:$0xf]
        %v807 = vld [vmem:[#allocation9 + $0x10] sm:$0xf]
        %v808 = vld [vmem:[#allocation9 + $0x14] sm:$0xf]
        %v809 = vld [vmem:[#allocation9 + $0x18] sm:$0xf]
        %v810 = vld [vmem:[#allocation9 + $0x1c] sm:$0xf]
        %v811 = vld [vmem:[#allocation9 + $0x20] sm:$0xf]
        %v812 = vld [vmem:[#allocation9 + $0x24] sm:$0xf]
        %v813 = vld [vmem:[#allocation9 + $0x28] sm:$0xf]
        %v814 = vld [vmem:[#allocation9 + $0x2c] sm:$0xf]
        %v815 = vld [vmem:[#allocation9 + $0x30] sm:$0xf]
        %v816 = vld [vmem:[#allocation9 + $0x34] sm:$0xf]
        %v817 = vld [vmem:[#allocation9 + $0x38] sm:$0xf]
        %v818 = vld [vmem:[#allocation9 + $0x3c] sm:$0xf]
        %v835 = vunpack.c.l.b16 %v803
        %v836 = vunpack.c.l.b16 %v804
        %v837 = vunpack.c.l.b16 %v805
        %v838 = vunpack.c.l.b16 %v806
        %v839 = vunpack.c.l.b16 %v807
        %v840 = vunpack.c.l.b16 %v808
        %v841 = vunpack.c.l.b16 %v809
        %v842 = vunpack.c.l.b16 %v810
        %v843 = vunpack.c.l.b16 %v811
        %v844 = vunpack.c.l.b16 %v812
        %v845 = vunpack.c.l.b16 %v813
        %v846 = vunpack.c.l.b16 %v814
        %v847 = vunpack.c.l.b16 %v815
        %v848 = vunpack.c.l.b16 %v816
        %v849 = vunpack.c.l.b16 %v817
        %v850 = vunpack.c.l.b16 %v818
        %v851 = vpack.c.b16 %v836, %v835
        %v852 = vpack.c.b16 %v838, %v837
        %v853 = vpack.c.b16 %v840, %v839
        %v854 = vpack.c.b16 %v842, %v841
        %v855 = vpack.c.b16 %v844, %v843
        %v856 = vpack.c.b16 %v846, %v845
        %v857 = vpack.c.b16 %v848, %v847
        %v858 = vpack.c.b16 %v850, %v849
        %867 = vmatprep.subr.bf16.mxu0 0
        %868 = vmatpush1.bf16.msra.mxu0 %v858
        %869 = vmatprep.subr.bf16.mxu0 0
        %870 = vmatpush1.bf16.msra.mxu0 %v857
        %871 = vmatprep.subr.bf16.mxu0 0
        %872 = vmatpush1.bf16.msra.mxu0 %v856
        %873 = vmatprep.subr.bf16.mxu0 0
        %874 = vmatpush1.bf16.msra.mxu0 %v855
        %875 = vmatprep.subr.bf16.mxu0 0
        %876 = vmatpush1.bf16.msra.mxu0 %v854
        %877 = vmatprep.subr.bf16.mxu0 0
        %878 = vmatpush1.bf16.msra.mxu0 %v853
        %879 = vmatprep.subr.bf16.mxu0 0
        %880 = vmatpush1.bf16.msra.mxu0 %v852
        %881 = vmatprep.subr.bf16.mxu0 0
        %882 = vmatpush1.bf16.msra.mxu0 %v851
        %883 = vmatprep.subr.bf16.mxu0 0
        %884 = vmatpush2.bf16.msra.mxu0 0
        %885 = vmatprep.subr.bf16.mxu0 0
        %886 = vmatpush2.bf16.msra.mxu0 0
        %887 = vmatprep.subr.bf16.mxu0 0
        %888 = vmatpush2.bf16.msra.mxu0 0
        %889 = vmatprep.subr.bf16.mxu0 0
        %890 = vmatpush2.bf16.msra.mxu0 0
        %891 = vmatprep.subr.bf16.mxu0 0
        %892 = vmatpush2.bf16.msra.mxu0 0
        %893 = vmatprep.subr.bf16.mxu0 0
        %894 = vmatpush2.bf16.msra.mxu0 0
        %895 = vmatprep.subr.bf16.mxu0 0
        %896 = vmatpush2.bf16.msra.mxu0 0
        %897 = vmatprep.subr.bf16.mxu0 0
        %898 = vmatpush2.bf16.msra.mxu0 0
        %899 = vmatprep.mubr.bf16.mxu0 0
        %900 = vmatmul.mubr.bf16.gmra.mxu0 %v795
        %v901 = vpop.f32.mrf.mxu0
        %v902 = vadd.f32 0.0, %v901
        %v903 = vpop.f32.mrf.mxu0
        %v904 = vpop.f32.mrf.mxu0
        %v905 = vadd.f32 0.0, %v904
        %v906 = vpop.f32.mrf.mxu0
        %907 = vmatprep.mubr.bf16.mxu0 0
        %908 = vmatmul.mubr.bf16.gmra.mxu0 %v796
        %v909 = vpop.f32.mrf.mxu0
        %v910 = vadd.f32 0.0, %v909
        %v911 = vpop.f32.mrf.mxu0
        %v912 = vpop.f32.mrf.mxu0
        %v913 = vadd.f32 0.0, %v912
        %v914 = vpop.f32.mrf.mxu0
        %915 = vmatprep.mubr.bf16.mxu0 0
        %916 = vmatmul.mubr.bf16.gmra.mxu0 %v797
        %v917 = vpop.f32.mrf.mxu0
        %v918 = vadd.f32 0.0, %v917
        %v919 = vpop.f32.mrf.mxu0
        %v920 = vpop.f32.mrf.mxu0
        %v921 = vadd.f32 0.0, %v920
        %v922 = vpop.f32.mrf.mxu0
        %923 = vmatprep.mubr.bf16.mxu0 0
        %924 = vmatmul.mubr.bf16.gmra.mxu0 %v798
        %v925 = vpop.f32.mrf.mxu0
        %v926 = vadd.f32 0.0, %v925
        %v927 = vpop.f32.mrf.mxu0
        %v928 = vpop.f32.mrf.mxu0
        %v929 = vadd.f32 0.0, %v928
        %v930 = vpop.f32.mrf.mxu0
        %931 = vmatprep.mubr.bf16.mxu0 0
        %932 = vmatmul.mubr.bf16.gmra.mxu0 %v799
        %v933 = vpop.f32.mrf.mxu0
        %v934 = vadd.f32 0.0, %v933
        %v935 = vpop.f32.mrf.mxu0
        %v936 = vpop.f32.mrf.mxu0
        %v937 = vadd.f32 0.0, %v936
        %v938 = vpop.f32.mrf.mxu0
        %939 = vmatprep.mubr.bf16.mxu0 0
        %940 = vmatmul.mubr.bf16.gmra.mxu0 %v800
        %v941 = vpop.f32.mrf.mxu0
        %v942 = vadd.f32 0.0, %v941
        %v943 = vpop.f32.mrf.mxu0
        %v944 = vpop.f32.mrf.mxu0
        %v945 = vadd.f32 0.0, %v944
        %v946 = vpop.f32.mrf.mxu0
        %947 = vmatprep.mubr.bf16.mxu0 0
        %948 = vmatmul.mubr.bf16.gmra.mxu0 %v801
        %v949 = vpop.f32.mrf.mxu0
        %v950 = vadd.f32 0.0, %v949
        %v951 = vpop.f32.mrf.mxu0
        %v952 = vpop.f32.mrf.mxu0
        %v953 = vadd.f32 0.0, %v952
        %v954 = vpop.f32.mrf.mxu0
        %955 = vmatprep.mubr.bf16.mxu0 0
        %956 = vmatmul.mubr.bf16.gmra.mxu0 %v802
        %v957 = vpop.f32.mrf.mxu0
        %v958 = vadd.f32 0.0, %v957
        %v959 = vpop.f32.mrf.mxu0
        %v960 = vpop.f32.mrf.mxu0
        %v961 = vadd.f32 0.0, %v960
        %v962 = vpop.f32.mrf.mxu0
        %963 = vdwg.mxu0
        %964 = vst [vmem:[%s231] sm:$0xff] %v902
        %965 = vst [vmem:[%s231 + $0x8] sm:$0xff] %v905
        %966 = vst [vmem:[%s231 + $0x10] sm:$0xff] %v910
        %967 = vst [vmem:[%s231 + $0x18] sm:$0xff] %v913
        %968 = vst [vmem:[%s231 + $0x20] sm:$0xff] %v918
        %969 = vst [vmem:[%s231 + $0x28] sm:$0xff] %v921
        %970 = vst [vmem:[%s231 + $0x30] sm:$0xff] %v926
        %971 = vst [vmem:[%s231 + $0x38] sm:$0xff] %v929
        %972 = vst [vmem:[%s231 + $0x40] sm:$0xff] %v934
        %973 = vst [vmem:[%s231 + $0x48] sm:$0xff] %v937
        %974 = vst [vmem:[%s231 + $0x50] sm:$0xff] %v942
        %975 = vst [vmem:[%s231 + $0x58] sm:$0xff] %v945
        %976 = vst [vmem:[%s231 + $0x60] sm:$0xff] %v950
        %977 = vst [vmem:[%s231 + $0x68] sm:$0xff] %v953
        %978 = vst [vmem:[%s231 + $0x70] sm:$0xff] %v958
        %979 = vst [vmem:[%s231 + $0x78] sm:$0xff] %v961
        %s980 = sand.u32 %s111, 1
        %s981 = scalar_lea.sflag [#allocation6], %s980
        %s982 = sand.u32 %s111, 1
        %s983 = smul.addr %s982, 128
        %s984 = scalar_lea.vmem [#allocation10], %s983
        // Predicated region
        $region49: #{tpu_custom_call.1} parent=31 // pred_check
          %p985 = pneg %p121
        $region50: #{tpu_custom_call.1} parent=31 // pred_check_branch
          %987 = sbr.rel (%p985) target = $region52
        $region51: #{tpu_custom_call.1} parent=31 // pred_region
          %s988 = smul.u32 16, %s26
          %s990 = ssub.s32 2048, 2048
          %991 = vsyncadd %s981, %s990
          %s992 = smul.addr %s25, 16
          %s993 = sadd.s32 %s988, %s992
          %s994 = smul.addr %s993, 128
          %s995 = scalar_lea.hbm %s3, %s994
          %s996 = sshll.u32 %s984, 4
          %s997 = int_to_ptr.vmem [resolvable:$true] %s996
          %1002 = dma.vmem_to_hbm [thread:$0]  %s997, 2048, %s995, %s981, 128, 128, 8
        $region52: #{tpu_custom_call.1} parent=31 // pred_fallthru
          _
      $region32: #{tpu_custom_call.1} parent=5 // pred_fallthru
        _
      %p1003 = scmp.le.s32.totalorder 2, %s16
      // Predicated region
      $region53: #{tpu_custom_call.1} parent=5 // pred_check
        %p1004 = pneg %p1003
      $region54: #{tpu_custom_call.1} parent=5 // pred_check_branch
        %1006 = sbr.rel (%p1004) target = $region56
      $region55: #{tpu_custom_call.1} parent=5 // pred_region
        %s1007 = ssub.s32 %s16, 2
        // Predicated region
        $region57: #{tpu_custom_call.1} parent=55 // pred_check
          %p1008 = pneg %p127
        $region58: #{tpu_custom_call.1} parent=55 // pred_check_branch
          %1010 = sbr.rel (%p1008) target = $region60
        $region59: #{tpu_custom_call.1} parent=55 // pred_region
          %s1011 = sand.u32 %s112, 1
          %s1012 = scalar_lea.sflag [#allocation6], %s1011
          %s1013 = sand.u32 %s112, 1
          %s1014 = smul.addr %s1013, 128
          %s1015 = scalar_lea.vmem [#allocation10], %s1014
          %1016 = dma.done %s1012, 2048
        $region60: #{tpu_custom_call.1} parent=55 // pred_fallthru
          _
      $region56: #{tpu_custom_call.1} parent=5 // pred_fallthru
        _
    $region6: #{tpu_custom_call.1} parent=1 // loop_footer
      %s20 = sadd.s32 1, %s16
    $region7: #{tpu_custom_call.1} parent=1 // loop_footer_branch
      %15 = sbr.rel target = $region3
    $region8: #{tpu_custom_call.1} parent=1 // loop_exit
      _
    %1017 = vsyncpa [#allocation5], 1
    %s1018 = scalar_lea.sflag [#allocation5], 1
    %1019 = vsyncpa %s1018, 1
    %1020 = vsyncpa [#allocation8], 1
    %1021 = vsyncpa [#allocation6], 1
    %s1022 = scalar_lea.sflag [#allocation6], 1
    %1023 = vsyncpa %s1022, 1

</llo_original>
